<compile_context>
chip_gen: v5e
topology: v5e:2x2
jax: 0.10.0
libtpu: 0.0.40
codegen_flags: <defaults>
</compile_context>

<pallas_src>
import functools

import jax
import jax.numpy as jnp
from jax.experimental import pallas as pl
from jax.experimental.pallas import tpu as pltpu


_N_F32_TEMPS = 6            # x_f32, d, d2, y, sigmoid(y), product (conservative)
_FIXED_OVERHEAD = 2 << 20   # Mosaic internal scratch / semaphores headroom


def _ceil_to(v, m):
    return ((v + m - 1) // m) * m


# --------------------------------------------------------------------------
# Kernels
# --------------------------------------------------------------------------
def _simam_plane_kernel(x_ref, o_ref, *, n_e_lambda, quarter_n):
    """Single-pass kernel: each block holds whole (H*W) planes as rows."""
    x = x_ref[...].astype(jnp.float32)

    mu = jnp.mean(x, axis=-1, keepdims=True)
    d = x - mu
    d2 = d * d
    s = jnp.sum(d2, axis=-1, keepdims=True)

    # y = d2 / (4 * (s / n + e_lambda)) + 0.5
    #   = d2 * (n / 4) / (s + n * e_lambda) + 0.5
    denom = s + n_e_lambda
    r = pl.reciprocal(denom, approx=True)       # EUP slot (nearly free)
    r = r * (2.0 - denom * r)                   # one Newton step -> ~f32 accuracy
    y = d2 * (r * quarter_n) + 0.5

    # TODO(synk): compute sigmoid in bf16 on v6e/v7x if a bundle dump ever
    # shows the EUP slot co-dominant; HBM is the ceiling today.
    o_ref[...] = (x * jax.nn.sigmoid(y)).astype(o_ref.dtype)


def _simam_two_pass_kernel(x_ref, o_ref, sum_ref, sumsq_ref, *,
                           hw, hw_tile, inv_hw, n_e_lambda, quarter_n):
    """Two-pass kernel for planes too large to hold a whole row in VMEM.

    Grid: (bc_tiles, 2, hw_tiles).  Pass p=0 accumulates sum / sum-of-squares
    per row; pass p=1 recomputes the elementwise output while streaming the
    same data again.  sum((x-mu)^2) = sum(x^2) - (sum x)^2 / hw.
    """
    p = pl.program_id(1)
    k = pl.program_id(2)

    @pl.when(jnp.logical_and(p == 0, k == 0))
    def _():
        sum_ref[...] = jnp.zeros_like(sum_ref)
        sumsq_ref[...] = jnp.zeros_like(sumsq_ref)

    x = x_ref[...].astype(jnp.float32)
    # Mask the ragged H*W tail so garbage lanes never enter the reduction.
    col = jax.lax.broadcasted_iota(jnp.int32, x.shape, 1) + k * hw_tile
    valid = col < hw

    @pl.when(p == 0)
    def _():
        xm = jnp.where(valid, x, 0.0)
        sum_ref[...] += jnp.sum(xm, axis=-1, keepdims=True)
        sumsq_ref[...] += jnp.sum(xm * xm, axis=-1, keepdims=True)

    @pl.when(p == 1)
    def _():
        sx = sum_ref[...]
        mu = sx * inv_hw
        s = sumsq_ref[...] - sx * mu
        d = x - mu
        d2 = d * d
        denom = s + n_e_lambda
        r = pl.reciprocal(denom, approx=True)
        r = r * (2.0 - denom * r)
        y = d2 * (r * quarter_n) + 0.5
        # OOB rows / ragged tail lanes are computed but never written back.
        o_ref[...] = (x * jax.nn.sigmoid(y)).astype(o_ref.dtype)


# --------------------------------------------------------------------------
# Tiling helpers
# --------------------------------------------------------------------------
def _vmem_capacity_bytes():
    try:
        return int(pltpu.get_tpu_info().vmem_capacity_bytes)
    except Exception:
        return 64 << 20   # conservative: v7x per-TensorCore VMEM


def _choose_rows_tile(bc, granule, max_rows, min_blocks):
    """Largest rows-tile (multiple of `granule`, <= max_rows) preferring:
    (1) even grid with >= min_blocks, (2) >= min_blocks, (3) even grid,
    (4) anything.  grid == 1 counts as balanced."""
    hi = min(max_rows, _ceil_to(bc, granule))
    hi = max((hi // granule) * granule, granule)
    fallback = {}
    t = hi
    while t >= granule:
        g = -(-bc // t)
        even = (g % 2 == 0) or (g == 1)
        if even and g >= min_blocks:
            return t, g
        if g >= min_blocks and "enough" not in fallback:
            fallback["enough"] = (t, g)
        if even and "even" not in fallback:
            fallback["even"] = (t, g)
        if "any" not in fallback:
            fallback["any"] = (t, g)
        t -= granule
    for key in ("enough", "even", "any"):
        if key in fallback:
            return fallback[key]
    return granule, -(-bc // granule)


# --------------------------------------------------------------------------
# Public entry point
# --------------------------------------------------------------------------
def simam(x, e_lambda=1e-4, *, vmem_budget_bytes=None):
    """SimAM forward.  x: (B, C, H, W) array (NCHW).  Matches the PyTorch module."""
    b, c, h, w = x.shape
    bc, hw = b * c, h * w
    n = float(hw - 1)
    itemsize = x.dtype.itemsize

    # Dtype-aware sublane granule: 8 (f32) / 16 (bf16) / 32 (int8, fp8).
    granule = 8 * max(1, 4 // max(1, itemsize))

    vmem_cap = _vmem_capacity_bytes()
    if vmem_budget_bytes is None:
        # ~5/8 of per-core VMEM: ≈40 MiB on v7x (64 MiB/TC), ≈80 MiB on v5e/v6e.
        budget = min(vmem_cap * 5 // 8, 80 << 20)
    else:
        budget = int(vmem_budget_bytes)

    # Per-element working-set bytes: in + out double buffers + f32 temporaries.
    per_elem = 2 * itemsize + 2 * itemsize + _N_F32_TEMPS * 4
    max_tile_elems = max((budget - _FIXED_OVERHEAD) // per_elem, granule * 128)

    consts = dict(n_e_lambda=n * float(e_lambda), quarter_n=n / 4.0)
    x2d = x.reshape(bc, hw)

    if granule * hw <= max_tile_elems:
        # ---- Path A: whole planes as rows, 1-D parallel grid over B*C ----
        total_bytes = bc * hw * itemsize
        min_blocks = 8 if total_bytes >= (8 << 20) else 1
        max_rows = max((max_tile_elems // hw) // granule * granule, granule)
        rows_tile, grid = _choose_rows_tile(bc, granule, max_rows, min_blocks)

        tile_elems = rows_tile * hw
        est = tile_elems * per_elem + _FIXED_OVERHEAD
        vmem_limit = int(min(vmem_cap, max(32 << 20, est + (8 << 20))))

        # TODO(synk): for H*W that is not a multiple of 128 (196, 784, ...)
        # the tail lane-group of every row is masked on VPU/vst; folding rows'
        # tails into full lane groups would recover occupancy, but only via
        # in-kernel layout plumbing (never an extra HBM pass).
        kernel = functools.partial(_simam_plane_kernel, **consts)
        out2d = pl.pallas_call(
            kernel,
            out_shape=jax.ShapeDtypeStruct((bc, hw), x.dtype),
            grid_spec=pltpu.PrefetchScalarGridSpec(
                num_scalar_prefetch=0,
                grid=(grid,),
                in_specs=[pl.BlockSpec((rows_tile, hw), lambda i: (i, 0))],
                out_specs=pl.BlockSpec((rows_tile, hw), lambda i: (i, 0)),
            ),
            compiler_params=pltpu.CompilerParams(
                dimension_semantics=("parallel",),
                vmem_limit_bytes=vmem_limit,
            ),
        )(x2d)
    else:
        # ---- Path B: plane too big for one row-block -> two-pass over H*W ----
        rows_tile = granule
        hw_tile = max((max_tile_elems // rows_tile) // 128 * 128, 128)
        grid_bc = -(-bc // rows_tile)
        grid_hw = -(-hw // hw_tile)

        tile_elems = rows_tile * hw_tile
        scratch_bytes = 2 * _ceil_to(rows_tile, 8) * 128 * 4   # padded accumulators
        est = tile_elems * per_elem + scratch_bytes + _FIXED_OVERHEAD
        vmem_limit = int(min(vmem_cap, max(32 << 20, est + (8 << 20))))

        kernel = functools.partial(
            _simam_two_pass_kernel,
            hw=hw, hw_tile=hw_tile, inv_hw=1.0 / float(hw), **consts)
        out2d = pl.pallas_call(
            kernel,
            out_shape=jax.ShapeDtypeStruct((bc, hw), x.dtype),
            grid_spec=pltpu.PrefetchScalarGridSpec(
                num_scalar_prefetch=0,
                grid=(grid_bc, 2, grid_hw),
                in_specs=[pl.BlockSpec((rows_tile, hw_tile),
                                       lambda i, p, k: (i, k))],
                # During pass 0 the output block index stays (i, 0) so nothing
                # is flushed; pass 1 writes each block exactly once.
                out_specs=pl.BlockSpec((rows_tile, hw_tile),
                                       lambda i, p, k: (i, p * k)),
                scratch_shapes=[pltpu.VMEM((rows_tile, 1), jnp.float32),
                                pltpu.VMEM((rows_tile, 1), jnp.float32)],
            ),
            compiler_params=pltpu.CompilerParams(
                dimension_semantics=("parallel", "arbitrary", "arbitrary"),
                vmem_limit_bytes=vmem_limit,
            ),
        )(x2d)

    return out2d.reshape(b, c, h, w)


# --------------------------------------------------------------------------
# Pure-JAX reference (mirrors the PyTorch forward)
# --------------------------------------------------------------------------
def _simam_ref(x, e_lambda=1e-4):
    n = x.shape[2] * x.shape[3] - 1
    mu = jnp.mean(x, axis=(2, 3), keepdims=True)
    d2 = (x - mu) ** 2
    y = d2 / (4.0 * (jnp.sum(d2, axis=(2, 3), keepdims=True) / n + e_lambda)) + 0.5
    return x * jax.nn.sigmoid(y)


if __name__ == "__main__":
    key = jax.random.PRNGKey(0)

    def _check(name, x, out, ref, atol, rtol):
        assert out.shape == x.shape and out.dtype == x.dtype, f"shape/dtype: {name}"
        ok = jnp.allclose(out.astype(jnp.float32), ref.astype(jnp.float32),
                          atol=atol, rtol=rtol)
        assert bool(ok), f"mismatch: {name}"

    # 1) Primary shape: lane-dense rows (H*W = 256), single block.
    x1 = jax.random.normal(key, (2, 4, 16, 16), dtype=jnp.float32)
    out1 = jax.block_until_ready(simam(x1))
    _check("primary", x1, out1, _simam_ref(x1), 2e-5, 2e-5)

    # 2) Small-spatial (H*W = 49 < 128): natural layout kept, masked stores,
    #    no wrapper transpose / extra HBM pass.
    x2 = jax.random.normal(jax.random.fold_in(key, 1), (3, 5, 7, 7), jnp.float32)
    out2 = jax.block_until_ready(simam(x2))
    _check("small-spatial", x2, out2, _simam_ref(x2), 2e-5, 2e-5)

    # 3) Forced tiny budget: multi-block even grid with a ragged last row-block.
    x3 = jax.random.normal(jax.random.fold_in(key, 2), (2, 6, 16, 16), jnp.float32)
    out3 = jax.block_until_ready(simam(x3, vmem_budget_bytes=(2 << 20) + 100_000))
    _check("ragged-rows", x3, out3, _simam_ref(x3), 2e-5, 2e-5)

    # 4) Forced two-pass path: plane larger than one row-block at this budget,
    #    with ragged H*W tail (3600 = 14*256 + 16) and ragged rows.
    x4 = jax.random.normal(jax.random.fold_in(key, 3), (1, 2, 60, 60), jnp.float32)
    out4 = jax.block_until_ready(simam(x4, vmem_budget_bytes=(2 << 20) + 100_000))
    _check("two-pass", x4, out4, _simam_ref(x4), 5e-5, 5e-5)

    # 5) bf16 input: exercises the 16-row sublane granule; math stays f32 in-kernel.
    x5 = jax.random.normal(jax.random.fold_in(key, 4), (2, 4, 16, 16),
                           jnp.float32).astype(jnp.bfloat16)
    out5 = jax.block_until_ready(simam(x5))
    ref5 = _simam_ref(x5.astype(jnp.float32)).astype(jnp.bfloat16)
    _check("bf16", x5, out5, ref5, 5e-2, 5e-2)

    print("KERNEL_OK")
</pallas_src>

<mosaic_0001>
module attributes {stable_mosaic.version = 11 : i64} {
  func.func @_simam_plane_kernel(%arg0: i32, %arg1: memref<8x256xf32, #tpu.memory_space<vmem>>, %arg2: memref<8x256xf32, #tpu.memory_space<vmem>>) attributes {dimension_semantics = [#tpu.dimension_semantics<parallel>], iteration_bounds = array<i64: 1>, scalar_prefetch = 0 : i64, scratch_operands = 0 : i64, tpu.core_type = #tpu.core_type<tc>, window_params = [{transform_indices = @transform_0, window_bounds = array<i64: 8, 256>}, {transform_indices = @transform_1, window_bounds = array<i64: 8, 256>}]} {
    %c0 = arith.constant 0 : index
    %c0_0 = arith.constant 0 : index
    %0 = vector.load %arg1[%c0, %c0_0] : memref<8x256xf32, #tpu.memory_space<vmem>>, vector<8x256xf32>
    %cst = arith.constant dense<0.000000e+00> : vector<8xf32>
    %1 = vector.multi_reduction <add>, %0, %cst [1] : vector<8x256xf32> to vector<8xf32>
    %2 = vector.shape_cast %1 : vector<8xf32> to vector<8x1xf32>
    %cst_1 = arith.constant 2.560000e+02 : f32
    %3 = vector.broadcast %cst_1 : f32 to vector<8x1xf32>
    %4 = arith.divf %2, %3 : vector<8x1xf32>
    %5 = vector.broadcast %4 : vector<8x1xf32> to vector<8x256xf32>
    %6 = arith.subf %0, %5 : vector<8x256xf32>
    %7 = arith.mulf %6, %6 : vector<8x256xf32>
    %cst_2 = arith.constant dense<0.000000e+00> : vector<8xf32>
    %8 = vector.multi_reduction <add>, %7, %cst_2 [1] : vector<8x256xf32> to vector<8xf32>
    %9 = vector.shape_cast %8 : vector<8xf32> to vector<8x1xf32>
    %cst_3 = arith.constant 2.550000e-02 : f32
    %10 = vector.broadcast %cst_3 : f32 to vector<8x1xf32>
    %11 = arith.addf %9, %10 : vector<8x1xf32>
    %12 = tpu.reciprocal %11 {approx = true} : vector<8x1xf32> -> vector<8x1xf32>
    %13 = arith.mulf %11, %12 : vector<8x1xf32>
    %cst_4 = arith.constant 2.000000e+00 : f32
    %14 = vector.broadcast %cst_4 : f32 to vector<8x1xf32>
    %15 = arith.subf %14, %13 : vector<8x1xf32>
    %16 = arith.mulf %12, %15 : vector<8x1xf32>
    %cst_5 = arith.constant 6.375000e+01 : f32
    %17 = vector.broadcast %cst_5 : f32 to vector<8x1xf32>
    %18 = arith.mulf %16, %17 : vector<8x1xf32>
    %19 = vector.broadcast %18 : vector<8x1xf32> to vector<8x256xf32>
    %20 = arith.mulf %7, %19 : vector<8x256xf32>
    %cst_6 = arith.constant 5.000000e-01 : f32
    %21 = vector.broadcast %cst_6 : f32 to vector<8x256xf32>
    %22 = arith.addf %20, %21 : vector<8x256xf32>
    %23 = arith.negf %22 : vector<8x256xf32>
    %24 = math.exp %23 : vector<8x256xf32>
    %cst_7 = arith.constant 1.000000e+00 : f32
    %25 = vector.broadcast %cst_7 : f32 to vector<8x256xf32>
    %26 = arith.addf %25, %24 : vector<8x256xf32>
    %27 = arith.divf %25, %26 : vector<8x256xf32>
    %28 = arith.mulf %0, %27 : vector<8x256xf32>
    %c0_8 = arith.constant 0 : index
    %c0_9 = arith.constant 0 : index
    %29 = vector.load %arg2[%c0_8, %c0_9] : memref<8x256xf32, #tpu.memory_space<vmem>>, vector<8x256xf32>
    tpu.vector_store %arg2[%c0_8, %c0_9], %28 {strides = array<i32>} : memref<8x256xf32, #tpu.memory_space<vmem>>, vector<8x256xf32>,
    return
  }
  func.func @transform_0(%arg0: i32) -> (i32, i32) {
    %c0_i32 = arith.constant 0 : i32
    %c0_i32_0 = arith.constant 0 : i32
    return %arg0, %c0_i32 : i32, i32
  }
  func.func @transform_1(%arg0: i32) -> (i32, i32) {
    %c0_i32 = arith.constant 0 : i32
    %c0_i32_0 = arith.constant 0 : i32
    return %arg0, %c0_i32 : i32, i32
  }
}

</mosaic_0001>

<llo_original>
// kernel: tpu_custom_call.1
$region0: #{tpu_custom_call.1}
  #allocation0 [shape = 'u32[]', space=smem, size = 0x4, offset = 0x4, fixed_abs, tag = 'smem constant byte address 0x4 - core index']
  #allocation1 [shape = 'u32[72,128]{1,0:T(1,128)}', space=vmem, size = 0x9000, scoped, tag = 'internal scratch']
  %s0 = inlined_call_operand.hbm [shape: f32[8,256], index: 0, kind: input, shape index: {}]
  %s1 = inlined_call_operand.hbm [shape: f32[8,256], index: 1, kind: output, shape index: {}]
  %s2 = sld [smem:[#allocation0]]
  $region18: #{tpu_custom_call.1} parent=0
    _
  %s4 = ssub.s32 1, %s2
  %s5 = scalar_select 0, %s4, %s2
  $region1: #{tpu_custom_call.1} parent=0
    #allocation2 [shape = 'u8[8192]{0}', space=vmem, size = 0x2000, scoped, tag = 'input window, operand 0, single buffered']
    #allocation3 [shape = 's32[1]{0}', space=sflag, size = 0x4, scoped, tag = 'scoped memory for tpu_custom_call.1']
    #allocation4 [shape = 's32[1]{0}', space=sflag, size = 0x4, scoped, tag = 'scoped memory for tpu_custom_call.1']
    #allocation5 [shape = 'u8[8192]{0}', space=vmem, size = 0x2000, scoped, tag = 'output window, operand 0, single buffered']
    %6 = vsyncpa [#allocation3], 0
    %7 = vsyncpa [#allocation4], 0
    // Predicated region
    $region2: #{tpu_custom_call.1} parent=1 // pred_check
      _
    $region3: #{tpu_custom_call.1} parent=1 // pred_check_branch
      %9 = sbr.rel (0) target = $region5
    $region4: #{tpu_custom_call.1} parent=1 // pred_region
      %11 = vsyncadd [#allocation3], 0
      %s13 = sshll.u32 %s0, 4
      %s14 = int_to_ptr.hbm [resolvable:$true] %s13
      %s15 = sshll.u32 [#allocation2], 4
      %s16 = int_to_ptr.vmem [resolvable:$true] %s15
      %18 = dma.hbm_to_vmem [thread:$0]  %s14, 256, %s16, [#allocation3]
    $region5: #{tpu_custom_call.1} parent=1 // pred_fallthru
      _
    // Predicated region
    $region6: #{tpu_custom_call.1} parent=1 // pred_check
      _
    $region7: #{tpu_custom_call.1} parent=1 // pred_check_branch
      %20 = sbr.rel (0) target = $region9
    $region8: #{tpu_custom_call.1} parent=1 // pred_region
      %22 = dma.done [#allocation3], 256
    $region9: #{tpu_custom_call.1} parent=1 // pred_fallthru
      _
    %v23 = vld [vmem:[#allocation2] sm:$0xff]
    %v24 = vld [vmem:[#allocation2 + $0x8] sm:$0xff]
    %v25 = vadd.f32 %v23, %v24
    %26 = vadd.xlane.f32.xlu0 %v25
    %v27 = vpop.xlane.xlu0 %26
    %v28 = vrcp.pop 256.0
    %v29 = vmul.f32 256.0, %v28
    %v30 = vsub.f32 1.0, %v29
    %v31 = vmul.f32 %v28, %v30
    %v32 = vadd.f32 %v28, %v31
    %vm33 = vweird.f32 %v28
    %v34 = vsel %vm33, %v28, %v32
    %v35 = vmul.f32 %v27, %v34
    %v36 = vsub.f32 %v23, %v35
    %v37 = vsub.f32 %v24, %v35
    %v38 = vmul.f32 %v36, %v36
    %v39 = vmul.f32 %v37, %v37
    %v40 = vadd.f32 %v38, %v39
    %41 = vadd.xlane.f32.xlu0 %v40
    %v42 = vpop.xlane.xlu0 %41
    %v43 = vadd.f32 %v42, 0.0255
    %v44 = vrcp.pop %v43
    %v45 = vmul.f32 %v43, %v44
    %v46 = vsub.f32 2.0, %v45
    %v47 = vmul.f32 %v44, %v46
    %v48 = vmul.f32 %v47, 63.75
    %v49 = vmul.f32 %v38, %v48
    %v50 = vmul.f32 %v39, %v48
    %v51 = vadd.f32 %v49, 0.5
    %v52 = vadd.f32 %v50, 0.5
    %v53 = vxor.u32 %v51, 2147483648
    %v54 = vxor.u32 %v52, 2147483648
    %v55 = vmul.f32 %v53, 1.442695
    %v56 = vpow.pop %v55
    %v57 = vmul.f32 %v54, 1.442695
    %v58 = vpow.pop %v57
    %v59 = vadd.f32 %v56, 1.0
    %v60 = vadd.f32 %v58, 1.0
    %v61 = vrcp.pop %v59
    %v62 = vmul.f32 %v59, %v61
    %v63 = vsub.f32 1.0, %v62
    %v64 = vmul.f32 %v61, %v63
    %v65 = vadd.f32 %v61, %v64
    %vm66 = vweird.f32 %v59
    %vm67 = vweird.f32 %v61
    %vm68 = vmor %vm66, %vm67
    %v69 = vsel %vm68, %v61, %v65
    %v70 = vand.u32 2147483647, %v59
    %vm71 = vcmp.eq.f32.partialorder %v70, 8.507059e+37
    %v72 = vand.u32 %v59, 2147483648
    %v73 = vor.u32 1.1754944e-38, %v72
    %v74 = vsel %vm71, %v73, %v69
    %v75 = vmul.f32 1.0, %v74
    %v76 = vrcp.pop %v60
    %v77 = vmul.f32 %v60, %v76
    %v78 = vsub.f32 1.0, %v77
    %v79 = vmul.f32 %v76, %v78
    %v80 = vadd.f32 %v76, %v79
    %vm81 = vweird.f32 %v60
    %vm82 = vweird.f32 %v76
    %vm83 = vmor %vm81, %vm82
    %v84 = vsel %vm83, %v76, %v80
    %v85 = vand.u32 2147483647, %v60
    %vm86 = vcmp.eq.f32.partialorder %v85, 8.507059e+37
    %v87 = vand.u32 %v60, 2147483648
    %v88 = vor.u32 1.1754944e-38, %v87
    %v89 = vsel %vm86, %v88, %v84
    %v90 = vmul.f32 1.0, %v89
    %v91 = vmul.f32 %v23, %v75
    %v92 = vmul.f32 %v24, %v90
    %93 = vst [vmem:[#allocation5] sm:$0xff] %v91
    %94 = vst [vmem:[#allocation5 + $0x8] sm:$0xff] %v92
    // Predicated region
    $region10: #{tpu_custom_call.1} parent=1 // pred_check
      _
    $region11: #{tpu_custom_call.1} parent=1 // pred_check_branch
      %96 = sbr.rel (0) target = $region13
    $region12: #{tpu_custom_call.1} parent=1 // pred_region
      %98 = vsyncadd [#allocation4], 0
      %s100 = sshll.u32 [#allocation5], 4
      %s101 = int_to_ptr.vmem [resolvable:$true] %s100
      %s102 = sshll.u32 %s1, 4
      %s103 = int_to_ptr.hbm [resolvable:$true] %s102
      %105 = dma.vmem_to_hbm [thread:$0]  %s101, 256, %s103, [#allocation4]
    $region13: #{tpu_custom_call.1} parent=1 // pred_fallthru
      _
    // Predicated region
    $region14: #{tpu_custom_call.1} parent=1 // pred_check
      _
    $region15: #{tpu_custom_call.1} parent=1 // pred_check_branch
      %107 = sbr.rel (0) target = $region17
    $region16: #{tpu_custom_call.1} parent=1 // pred_region
      %109 = dma.done [#allocation4], 256
    $region17: #{tpu_custom_call.1} parent=1 // pred_fallthru
      _
    %110 = vsyncpa [#allocation3], 1
    %111 = vsyncpa [#allocation4], 1

</llo_original>
